<compile_context>
chip_gen: v6e
topology: v6e:2x2x1
jax: 0.10.0
libtpu: 0.0.40
codegen_flags: <defaults>
</compile_context>

<pallas_src>
import functools

import jax
import jax.numpy as jnp
from jax.experimental import pallas as pl
from jax.experimental.pallas import tpu as pltpu


def _dsw_affine_kernel(x_ref, w_ref, b_ref, o_ref):
    # x_ref: (tm, K)   w_ref: (K, N)   b_ref: (1, N)   o_ref: (tm, N)
    acc = jnp.dot(x_ref[...], w_ref[...], preferred_element_type=jnp.float32)
    o_ref[...] = (acc + b_ref[...]).astype(o_ref.dtype)


def _round_up(x, m):
    return (x + m - 1) // m * m


def _vmem_capacity_bytes():
    try:
        return int(pltpu.get_tpu_info().vmem_capacity_bytes)
    except Exception:
        return 64 * 1024 * 1024  # conservative fallback (v7x per-TC VMEM)


def _sublane(itemsize):
    # sublane packing: 8 rows for 4-byte, 16 for 2-byte, 32 for 1-byte dtypes
    return 8 * max(1, 4 // max(1, itemsize))


def _pick_tm(m_rows, k_eff, n_eff, in_itemsize, out_itemsize, sublane):
    """Largest sublane-aligned row tile fitting a VMEM budget, ~8 grid steps."""
    # VMEM per tile row (double-buffered input + output tiles); the (tm, K)
    # input tile occupies max(K, 128) lanes in VMEM regardless of K.
    k_lanes = max(_round_up(k_eff, 128), 128)
    n_lanes = max(_round_up(n_eff, 128), 128)
    per_row = 2 * k_lanes * in_itemsize + 2 * n_lanes * out_itemsize
    vmem_cap = _vmem_capacity_bytes()
    budget = min(20 * 1024 * 1024, vmem_cap // 3)
    tm = max(sublane, budget // per_row)
    tm = min(tm, 8192)
    # Keep the DMA pipeline (and both v7x TensorCores) busy: aim for >= 8 grid
    # steps when that still gives >= 256-row tiles, else >= 2 steps.
    if m_rows >= 8 * 256:
        tm = min(tm, max(256, pl.cdiv(m_rows, 8)))
    elif m_rows > 2 * sublane:
        tm = min(tm, pl.cdiv(m_rows, 2))
    tm = max(sublane, tm // sublane * sublane)
    tm = min(tm, _round_up(m_rows, sublane))
    # Fixed VMEM: resident (double-buffered) weight + bias blocks.
    fixed = 2 * (_round_up(k_eff, sublane) * n_lanes * in_itemsize
                 + n_lanes * 4)
    needed = tm * per_row + fixed
    vmem_limit = int(min(max(needed + (4 << 20), 16 << 20),
                         vmem_cap - (8 << 20)))
    return tm, vmem_limit


def _wide_mxu():
    """True on generations with a 256-wide MXU (v6e / v7x)."""
    try:
        kind = jax.devices()[0].device_kind.lower()
    except Exception:
        return True
    return not any(t in kind for t in ("v2", "v3", "v4", "v5"))


@functools.partial(
    jax.jit,
    static_argnames=("seg_len", "compute_dtype", "out_dtype", "pack_rows"))
def _dsw_embedding_impl(x, weight, bias, *, seg_len, compute_dtype,
                        out_dtype, pack_rows):
    batch, ts_len, ts_dim = x.shape
    d_model = weight.shape[0]
    assert ts_len % seg_len == 0
    seg_num = ts_len // seg_len

    cdt = jnp.dtype(compute_dtype) if compute_dtype is not None else x.dtype
    odt = jnp.dtype(out_dtype) if out_dtype is not None else x.dtype

    # einops 'b (seg_num seg_len) d -> (b d seg_num) seg_len': one strided
    # transpose that fuses with the dtype cast under jit (single HBM pass).
    xs = x.reshape(batch, seg_num, seg_len, ts_dim)
    xs = jnp.transpose(xs, (0, 3, 1, 2))                       # b, d, s, l
    x_segment = xs.reshape(batch * ts_dim * seg_num, seg_len).astype(cdt)
    M = batch * ts_dim * seg_num

    if pack_rows:
        # Fill the 256-wide MXU: 2 logical rows per LHS row against a
        # block-diagonal RHS.  Both reshapes are contiguous row-major => free.
        k_eff, n_eff = 2 * seg_len, 2 * d_model
        w_t = weight.T.astype(cdt)
        w_blk = jnp.zeros((k_eff, n_eff), cdt)
        w_blk = w_blk.at[:seg_len, :d_model].set(w_t)
        w_blk = w_blk.at[seg_len:, d_model:].set(w_t)
        b2 = jnp.concatenate([bias, bias]).astype(jnp.float32).reshape(1, n_eff)
        x_in = x_segment.reshape(M // 2, k_eff)
        m_eff = M // 2
    else:
        k_eff, n_eff = seg_len, d_model
        w_blk = weight.T.astype(cdt)
        b2 = bias.astype(jnp.float32).reshape(1, n_eff)
        x_in = x_segment
        m_eff = M

    in_item = jnp.dtype(cdt).itemsize
    out_item = jnp.dtype(odt).itemsize
    sublane = max(_sublane(in_item), _sublane(out_item))
    tm, vmem_limit = _pick_tm(m_eff, k_eff, n_eff, in_item, out_item, sublane)

    out = pl.pallas_call(
        _dsw_affine_kernel,
        out_shape=jax.ShapeDtypeStruct((m_eff, n_eff), odt),
        grid_spec=pltpu.PrefetchScalarGridSpec(
            num_scalar_prefetch=0,
            grid=(pl.cdiv(m_eff, tm),),
            in_specs=[
                pl.BlockSpec((tm, k_eff), lambda i: (i, 0)),
                pl.BlockSpec((k_eff, n_eff), lambda i: (0, 0)),
                pl.BlockSpec((1, n_eff), lambda i: (0, 0)),
            ],
            out_specs=pl.BlockSpec((tm, n_eff), lambda i: (i, 0)),
        ),
        compiler_params=pltpu.CompilerParams(
            dimension_semantics=("parallel",),
            vmem_limit_bytes=vmem_limit),
    )(x_in, w_blk, b2)

    # '(b d seg_num) d_model -> b d seg_num d_model'.  For the packed path
    # (M/2, 2*d_model) -> (M, d_model) is the same contiguous reshape (free).
    return out.reshape(batch, ts_dim, seg_num, d_model)


def dsw_embedding_forward(x, weight, bias, *, seg_len, compute_dtype=None,
                          out_dtype=None, pack_rows=None):
    """Pallas implementation of Crossformer DSW_embedding.forward.

    x:      (batch, ts_len, ts_dim) with ts_len % seg_len == 0
    weight: (d_model, seg_len)   (nn.Linear layout)
    bias:   (d_model,)
    compute_dtype / out_dtype: optional bf16 paths (f32 accumulation); the
      defaults keep x.dtype for exact parity with the PyTorch module.
    pack_rows: None = auto (2 rows per MXU push on 256-wide MXUs when
      d_model <= 128 and the row count is even).
    Returns (batch, ts_dim, seg_num, d_model).
    """
    batch, ts_len, ts_dim = x.shape
    d_model = weight.shape[0]
    seg_num = ts_len // seg_len
    m_rows = batch * ts_dim * seg_num
    if pack_rows is None:
        pack_rows = (d_model <= 128) and (m_rows % 2 == 0) and _wide_mxu()
    return _dsw_embedding_impl(
        x, weight, bias, seg_len=seg_len, compute_dtype=compute_dtype,
        out_dtype=out_dtype, pack_rows=bool(pack_rows))


def _reference_forward(x, weight, bias, seg_len):
    batch, ts_len, ts_dim = x.shape
    seg_num = ts_len // seg_len
    xs = x.reshape(batch, seg_num, seg_len, ts_dim)
    xs = jnp.transpose(xs, (0, 3, 1, 2)).reshape(-1, seg_len)
    y = xs @ weight.T + bias
    return y.reshape(batch, ts_dim, seg_num, weight.shape[0])


if __name__ == "__main__":
    # Small shapes consistent with the module: batch=2, ts_len=16, ts_dim=4,
    # seg_len=8 (seg_num=2), d_model=32.
    batch, ts_len, ts_dim = 2, 16, 4
    seg_len, d_model = 8, 32

    key = jax.random.PRNGKey(0)
    kx, kw, kb = jax.random.split(key, 3)

    x = jax.random.normal(kx, (batch, ts_len, ts_dim), dtype=jnp.float32)

    # Deterministic nn.Linear-style init: U(-1/sqrt(in), 1/sqrt(in)).
    bound = 1.0 / (seg_len ** 0.5)
    weight = jax.random.uniform(kw, (d_model, seg_len), jnp.float32,
                                minval=-bound, maxval=bound)
    bias = jax.random.uniform(kb, (d_model,), jnp.float32,
                              minval=-bound, maxval=bound)

    ref = _reference_forward(x, weight, bias, seg_len)

    # Auto path (row-packed on v6e/v7x, plain on older generations).
    out = dsw_embedding_forward(x, weight, bias, seg_len=seg_len)
    out = jax.block_until_ready(out)
    assert out.shape == (batch, ts_dim, ts_len // seg_len, d_model)
    assert jnp.allclose(out, ref, atol=1e-5, rtol=1e-5)

    # Also exercise the non-packed path so both variants stay covered.
    out2 = dsw_embedding_forward(x, weight, bias, seg_len=seg_len,
                                 pack_rows=False)
    out2 = jax.block_until_ready(out2)
    assert jnp.allclose(out2, ref, atol=1e-5, rtol=1e-5)

    print("KERNEL_OK")
</pallas_src>

<mosaic_0001>
module attributes {stable_mosaic.version = 11 : i64} {
  func.func @_dsw_affine_kernel(%arg0: i32, %arg1: memref<8x16xf32, #tpu.memory_space<vmem>>, %arg2: memref<16x64xf32, #tpu.memory_space<vmem>>, %arg3: memref<1x64xf32, #tpu.memory_space<vmem>>, %arg4: memref<8x64xf32, #tpu.memory_space<vmem>>) attributes {dimension_semantics = [#tpu.dimension_semantics<parallel>], iteration_bounds = array<i64: 1>, scalar_prefetch = 0 : i64, scratch_operands = 0 : i64, tpu.core_type = #tpu.core_type<tc>, window_params = [{transform_indices = @transform_0, window_bounds = array<i64: 8, 16>}, {pipeline_mode = #tpu.pipeline_mode<synchronous>, transform_indices = @transform_1, window_bounds = array<i64: 16, 64>}, {pipeline_mode = #tpu.pipeline_mode<synchronous>, transform_indices = @transform_2, window_bounds = array<i64: 1, 64>}, {transform_indices = @transform_3, window_bounds = array<i64: 8, 64>}]} {
    %c0 = arith.constant 0 : index
    %c0_0 = arith.constant 0 : index
    %0 = vector.load %arg1[%c0, %c0_0] : memref<8x16xf32, #tpu.memory_space<vmem>>, vector<8x16xf32>
    %c0_1 = arith.constant 0 : index
    %c0_2 = arith.constant 0 : index
    %1 = vector.load %arg2[%c0_1, %c0_2] : memref<16x64xf32, #tpu.memory_space<vmem>>, vector<16x64xf32>
    %cst = arith.constant dense<0.000000e+00> : vector<8x64xf32>
    %2 = tpu.matmul %0, %1, %cst {dimension_numbers = #tpu.dot_dimension_numbers<[1], [0], [0], [1], [0, 0, 1, 1], [], []>} : vector<8x16xf32>, vector<16x64xf32>, vector<8x64xf32> -> vector<8x64xf32>
    %c0_3 = arith.constant 0 : index
    %c0_4 = arith.constant 0 : index
    %3 = vector.load %arg3[%c0_3, %c0_4] : memref<1x64xf32, #tpu.memory_space<vmem>>, vector<1x64xf32>
    %4 = vector.broadcast %3 : vector<1x64xf32> to vector<8x64xf32>
    %5 = arith.addf %2, %4 : vector<8x64xf32>
    %c0_5 = arith.constant 0 : index
    %c0_6 = arith.constant 0 : index
    %6 = vector.load %arg4[%c0_5, %c0_6] : memref<8x64xf32, #tpu.memory_space<vmem>>, vector<8x64xf32>
    tpu.vector_store %arg4[%c0_5, %c0_6], %5 {strides = array<i32>} : memref<8x64xf32, #tpu.memory_space<vmem>>, vector<8x64xf32>,
    return
  }
  func.func @transform_0(%arg0: i32) -> (i32, i32) {
    %c0_i32 = arith.constant 0 : i32
    %c0_i32_0 = arith.constant 0 : i32
    return %arg0, %c0_i32 : i32, i32
  }
  func.func @transform_1(%arg0: i32) -> (i32, i32) {
    %c0_i32 = arith.constant 0 : i32
    %c0_i32_0 = arith.constant 0 : i32
    %c0_i32_1 = arith.constant 0 : i32
    return %c0_i32, %c0_i32_0 : i32, i32
  }
  func.func @transform_2(%arg0: i32) -> (i32, i32) {
    %c0_i32 = arith.constant 0 : i32
    %c0_i32_0 = arith.constant 0 : i32
    %c0_i32_1 = arith.constant 0 : i32
    return %c0_i32, %c0_i32_0 : i32, i32
  }
  func.func @transform_3(%arg0: i32) -> (i32, i32) {
    %c0_i32 = arith.constant 0 : i32
    %c0_i32_0 = arith.constant 0 : i32
    return %arg0, %c0_i32 : i32, i32
  }
}

</mosaic_0001>

<llo_original>
// kernel: _dsw_embedding_impl.1
$region0: #{_dsw_embedding_impl.1}
  #allocation0 [shape = 'u32[]', space=smem, size = 0x4, offset = 0x4, fixed_abs, tag = 'smem constant byte address 0x4 - core index']
  #allocation1 [shape = 'u32[144,128]{1,0:T(1,128)}', space=vmem, size = 0x12000, scoped, tag = 'internal scratch']
  %s0 = inlined_call_operand.vmem [shape: f32[8,16], index: 0, kind: input, shape index: {}]
  %s1 = inlined_call_operand.vmem [shape: f32[16,64], index: 1, kind: input, shape index: {}]
  %s2 = inlined_call_operand.vmem [shape: f32[1,64], index: 2, kind: input, shape index: {}]
  %s3 = inlined_call_operand.vmem [shape: f32[8,64], index: 3, kind: output, shape index: {}]
  %s4 = sld [smem:[#allocation0]]
  $region22: #{_dsw_embedding_impl.1} parent=0
    _
  %s6 = ssub.s32 1, %s4
  %s7 = scalar_select 0, %s6, %s4
  // Predicated region
  $region2: #{_dsw_embedding_impl.1} parent=0 // pred_check
    _
  $region3: #{_dsw_embedding_impl.1} parent=0 // pred_check_branch
    %9 = sbr.rel (0) target = $region5
  $region4: #{_dsw_embedding_impl.1} parent=0 // pred_region
    _
  $region5: #{_dsw_embedding_impl.1} parent=0 // pred_fallthru
    _
  // Predicated region
  $region6: #{_dsw_embedding_impl.1} parent=0 // pred_check
    _
  $region7: #{_dsw_embedding_impl.1} parent=0 // pred_check_branch
    %11 = sbr.rel (0) target = $region9
  $region8: #{_dsw_embedding_impl.1} parent=0 // pred_region
    _
  $region9: #{_dsw_embedding_impl.1} parent=0 // pred_fallthru
    _
  // Predicated region
  $region10: #{_dsw_embedding_impl.1} parent=0 // pred_check
    _
  $region11: #{_dsw_embedding_impl.1} parent=0 // pred_check_branch
    %13 = sbr.rel (0) target = $region13
  $region12: #{_dsw_embedding_impl.1} parent=0 // pred_region
    _
  $region13: #{_dsw_embedding_impl.1} parent=0 // pred_fallthru
    _
  %v14 = vld [vmem:[%s0] sm:$0xff]
  %v15 = vld [vmem:[%s1] sm:$0xff]
  %v16 = vld [vmem:[%s1 + $0x8] sm:$0xff]
  %v17 = vld [vmem:[%s2] sm:$0x1]
  %v19 = vlaneseq
  %v20 = vshrl.u32 %v19, 7
  %v21 = vsub.s32 0, %v20
  %v22 = vrot.slane %v17, %v21
  %vm24 = vcmask 130048
  %v26 = vsel %vm24, %v14, 0
  %28 = vmatprep.subr.mxu0 0.0
  %29 = vmatpush1.msra.mxu0 0.0
  %30 = vmatprep.subr.mxu0 0.0
  %31 = vmatpush1.msra.mxu0 0.0
  %32 = vmatprep.subr.mxu0 0.0
  %33 = vmatpush1.msra.mxu0 0.0
  %34 = vmatprep.subr.mxu0 0.0
  %35 = vmatpush1.msra.mxu0 0.0
  %36 = vmatprep.subr.mxu0 0.0
  %37 = vmatpush1.msra.mxu0 0.0
  %38 = vmatprep.subr.mxu0 0.0
  %39 = vmatpush1.msra.mxu0 0.0
  %40 = vmatprep.subr.mxu0 0.0
  %41 = vmatpush1.msra.mxu0 0.0
  %42 = vmatprep.subr.mxu0 0.0
  %43 = vmatpush1.msra.mxu0 0.0
  %44 = vmatprep.subr.mxu0 0.0
  %45 = vmatpush1.msra.mxu0 0.0
  %46 = vmatprep.subr.mxu0 0.0
  %47 = vmatpush1.msra.mxu0 0.0
  %48 = vmatprep.subr.mxu0 0.0
  %49 = vmatpush1.msra.mxu0 0.0
  %50 = vmatprep.subr.mxu0 0.0
  %51 = vmatpush1.msra.mxu0 0.0
  %52 = vmatprep.subr.mxu0 0.0
  %53 = vmatpush1.msra.mxu0 0.0
  %54 = vmatprep.subr.mxu0 0.0
  %55 = vmatpush1.msra.mxu0 0.0
  %56 = vmatprep.subr.mxu0 0.0
  %57 = vmatpush1.msra.mxu0 %v16
  %58 = vmatprep.subr.mxu0 0.0
  %59 = vmatpush1.msra.mxu0 %v15
  %60 = vmatprep.subr.mxu0 0.0
  %61 = vmatpush2.msra.mxu0 0.0
  %62 = vmatprep.subr.mxu0 0.0
  %63 = vmatpush2.msra.mxu0 0.0
  %64 = vmatprep.subr.mxu0 0.0
  %65 = vmatpush2.msra.mxu0 0.0
  %66 = vmatprep.subr.mxu0 0.0
  %67 = vmatpush2.msra.mxu0 0.0
  %68 = vmatprep.subr.mxu0 0.0
  %69 = vmatpush2.msra.mxu0 0.0
  %70 = vmatprep.subr.mxu0 0.0
  %71 = vmatpush2.msra.mxu0 0.0
  %72 = vmatprep.subr.mxu0 0.0
  %73 = vmatpush2.msra.mxu0 0.0
  %74 = vmatprep.subr.mxu0 0.0
  %75 = vmatpush2.msra.mxu0 0.0
  %76 = vmatprep.subr.mxu0 0.0
  %77 = vmatpush2.msra.mxu0 0.0
  %78 = vmatprep.subr.mxu0 0.0
  %79 = vmatpush2.msra.mxu0 0.0
  %80 = vmatprep.subr.mxu0 0.0
  %81 = vmatpush2.msra.mxu0 0.0
  %82 = vmatprep.subr.mxu0 0.0
  %83 = vmatpush2.msra.mxu0 0.0
  %84 = vmatprep.subr.mxu0 0.0
  %85 = vmatpush2.msra.mxu0 0.0
  %86 = vmatprep.subr.mxu0 0.0
  %87 = vmatpush2.msra.mxu0 0.0
  %88 = vmatprep.subr.mxu0 0.0
  %89 = vmatpush2.msra.mxu0 0.0
  %90 = vmatprep.subr.mxu0 0.0
  %91 = vmatpush2.msra.mxu0 0.0
  %92 = vmatprep.mubr.f32.mxu0 0.0
  %93 = vmatmul.mubr.f32.gmra.mxu0 %v26
  %v94 = vpop.f32.mrf.mxu0
  %v95 = vadd.f32 %v22, %v94
  %v96 = vpop.f32.mrf.mxu0
  %97 = vdwg.mxu0
  %vm98 = vcmask 523264
  %99 = vst.msk [vmem:[%s3] sm:$0xff] %vm98, %v95
  // Predicated region
  $region14: #{_dsw_embedding_impl.1} parent=0 // pred_check
    _
  $region15: #{_dsw_embedding_impl.1} parent=0 // pred_check_branch
    %101 = sbr.rel (0) target = $region17
  $region16: #{_dsw_embedding_impl.1} parent=0 // pred_region
    _
  $region17: #{_dsw_embedding_impl.1} parent=0 // pred_fallthru
    _
  // Predicated region
  $region18: #{_dsw_embedding_impl.1} parent=0 // pred_check
    _
  $region19: #{_dsw_embedding_impl.1} parent=0 // pred_check_branch
    %103 = sbr.rel (0) target = $region21
  $region20: #{_dsw_embedding_impl.1} parent=0 // pred_region
    _
  $region21: #{_dsw_embedding_impl.1} parent=0 // pred_fallthru
    _

</llo_original>
